<compile_context>
chip_gen: v7x
topology: tpu7x:2x2x1
jax: 0.10.0
libtpu: 0.0.40
codegen_flags: <defaults>
</compile_context>

<pallas_src>
import jax
import jax.numpy as jnp
from jax.experimental import pallas as pl
from jax.experimental.pallas import tpu as pltpu


# ---------------------------------------------------------------------------
# Chunking policy for the HBM->HBM DMA copy.
# A single large DMA already streams near full HBM bandwidth; a few chunks are
# issued concurrently only to overlap DMA issue latency / engines on larger
# inputs.  Tiny inputs use one DMA.
# ---------------------------------------------------------------------------
_MAX_CHUNKS = 8
_MIN_CHUNK_BYTES = 512 * 1024  # do not split below ~0.5 MiB per chunk


def _pick_chunking(shape, nbytes):
    """Static chunk boundaries along the first non-unit axis (or None)."""
    if nbytes < 2 * _MIN_CHUNK_BYTES:
        return None, (0, 0)
    axis = None
    for i, d in enumerate(shape):
        if d >= 2:
            axis = i
            break
    if axis is None:  # all dims are 1 (or 0)
        return None, (0, 0)
    extent = shape[axis]
    n_chunks = int(min(_MAX_CHUNKS, extent, nbytes // _MIN_CHUNK_BYTES))
    if n_chunks <= 1:
        return None, (0, 0)
    bounds = tuple(c * extent // n_chunks for c in range(n_chunks + 1))
    return axis, bounds


def _make_dma_copy_kernel(chunk_axis, bounds):
    """Build a kernel issuing HBM->HBM DMAs; returns (kernel, n_chunks)."""
    if chunk_axis is None:
        def kernel(x_hbm, o_hbm, sems):
            cp = pltpu.make_async_copy(x_hbm, o_hbm, sems.at[0])
            cp.start()
            cp.wait()
        return kernel, 1

    n_chunks = len(bounds) - 1
    # All axes before the first non-unit axis have extent 1 -> index them with 0.
    lead_idx = (0,) * chunk_axis

    def kernel(x_hbm, o_hbm, sems):
        copies = []
        # Static Python loop: unrolled once at trace time (no grid).
        for c in range(n_chunks):
            lo = bounds[c]
            sz = bounds[c + 1] - lo
            idx = lead_idx + (pl.ds(lo, sz),)
            cp = pltpu.make_async_copy(x_hbm.at[idx], o_hbm.at[idx], sems.at[c])
            cp.start()
            copies.append(cp)
        for cp in copies:
            cp.wait()

    return kernel, n_chunks


def _materializing_copy(x: jax.Array) -> jax.Array:
    """Identity copy of `x` via direct HBM->HBM DMA (no VMEM staging)."""
    nbytes = int(x.size) * int(jnp.dtype(x.dtype).itemsize)
    chunk_axis, bounds = _pick_chunking(tuple(x.shape), nbytes)
    kernel, n_chunks = _make_dma_copy_kernel(chunk_axis, bounds)

    return pl.pallas_call(
        kernel,
        out_shape=jax.ShapeDtypeStruct(x.shape, x.dtype),
        in_specs=[pl.BlockSpec(memory_space=pl.ANY)],
        out_specs=pl.BlockSpec(memory_space=pl.ANY),
        scratch_shapes=[pltpu.SemaphoreType.DMA((n_chunks,))],
        cost_estimate=pl.CostEstimate(
            flops=0, transcendentals=0, bytes_accessed=2 * nbytes),
    )(x)


def gray4d(x: jax.Array, *, materialize: bool = True) -> jax.Array:
    """Pad rank up to 4 with leading singleton dims; optionally materialize a copy.

    materialize=True  -> matches PyTorch `x.view(shape).repeat(1)` (fresh buffer).
    materialize=False -> metadata-only reshape, zero HBM traffic (preferred when
                         the copy semantics is not required).
    """
    shape4d = (1,) * max(0, 4 - x.ndim) + tuple(x.shape)
    x4 = jnp.reshape(x, shape4d)  # rank pad: metadata only (expand_dims-like)
    if not materialize:
        return x4
    return _materializing_copy(x4)


if __name__ == "__main__":
    key = jax.random.PRNGKey(0)
    k1, k2, k3, k4 = jax.random.split(key, 4)

    # Case 1: already-4D input (shape unchanged); single-DMA path.
    x4 = jax.random.normal(k1, (2, 4, 16, 16), dtype=jnp.float32)
    y4 = jax.block_until_ready(gray4d(x4))
    assert y4.shape == (2, 4, 16, 16) and y4.dtype == x4.dtype
    assert bool(jnp.array_equal(y4, x4))

    # Case 2: 3D input gets a leading singleton batch dim prepended.
    x3 = jax.random.normal(k2, (4, 16, 16), dtype=jnp.float32)
    y3 = jax.block_until_ready(gray4d(x3))
    assert y3.shape == (1, 4, 16, 16)
    assert bool(jnp.array_equal(y3, jnp.reshape(x3, (1, 4, 16, 16))))

    # Case 3: odd element count (not a multiple of 128) — handled by the same
    # HBM->HBM DMA path; no VMEM tiling constraints, no special fallback.
    x_odd = jax.random.normal(k3, (3, 5, 7), dtype=jnp.float32)
    y_odd = jax.block_until_ready(gray4d(x_odd))
    assert y_odd.shape == (1, 3, 5, 7)
    assert bool(jnp.array_equal(y_odd, jnp.reshape(x_odd, (1, 3, 5, 7))))

    # Case 4: ~2 MiB input exercises the chunked multi-DMA path (4 chunks).
    x_big = jax.random.normal(k4, (8, 4, 64, 256), dtype=jnp.float32)
    y_big = jax.block_until_ready(gray4d(x_big))
    assert y_big.shape == (8, 4, 64, 256)
    assert bool(jnp.array_equal(y_big, x_big))

    # Case 5: zero-copy variant (metadata reshape only, no pallas_call).
    y0 = jax.block_until_ready(gray4d(x3, materialize=False))
    assert y0.shape == (1, 4, 16, 16)
    assert bool(jnp.array_equal(y0, jnp.reshape(x3, (1, 4, 16, 16))))

    print("KERNEL_OK")
</pallas_src>

<mosaic_0001>
module attributes {stable_mosaic.version = 11 : i64} {
  func.func @kernel(%arg0: memref<2x4x16x16xf32, #tpu.memory_space<any>>, %arg1: memref<2x4x16x16xf32, #tpu.memory_space<any>>, %arg2: memref<1x!tpu.dma_semaphore, #tpu.memory_space<semaphore_mem>>) attributes {dimension_semantics = [], scalar_prefetch = 0 : i64, scratch_operands = 1 : i64, tpu.core_type = #tpu.core_type<tc>} {
    %c0_i32 = arith.constant 0 : i32
    %0 = tpu.memref_slice %arg2[%c0_i32] : memref<1x!tpu.dma_semaphore, #tpu.memory_space<semaphore_mem>> -> memref<1x!tpu.dma_semaphore, #tpu.memory_space<semaphore_mem>>
    %1 = tpu.memref_squeeze %0 : memref<1x!tpu.dma_semaphore, #tpu.memory_space<semaphore_mem>> -> memref<!tpu.dma_semaphore, #tpu.memory_space<semaphore_mem>>
    tpu.enqueue_dma source(%arg0 : memref<2x4x16x16xf32, #tpu.memory_space<any>>) target(%arg1 : memref<2x4x16x16xf32, #tpu.memory_space<any>>) target_semaphore(%1 : memref<!tpu.dma_semaphore, #tpu.memory_space<semaphore_mem>>)
    %c0_i32_0 = arith.constant 0 : i32
    %2 = tpu.memref_slice %arg2[%c0_i32_0] : memref<1x!tpu.dma_semaphore, #tpu.memory_space<semaphore_mem>> -> memref<1x!tpu.dma_semaphore, #tpu.memory_space<semaphore_mem>>
    %3 = tpu.memref_squeeze %2 : memref<1x!tpu.dma_semaphore, #tpu.memory_space<semaphore_mem>> -> memref<!tpu.dma_semaphore, #tpu.memory_space<semaphore_mem>>
    tpu.wait_dma2 semaphore(%3 : memref<!tpu.dma_semaphore, #tpu.memory_space<semaphore_mem>>) src(%arg0 : memref<2x4x16x16xf32, #tpu.memory_space<any>>) dst(%arg1 : memref<2x4x16x16xf32, #tpu.memory_space<any>>)
    return
  }
}

</mosaic_0001>

<llo_original>
// kernel: tpu_custom_call.1
$region0: #{tpu_custom_call.1}
  #allocation0 [shape = 'u32[]', space=smem, size = 0x4, offset = 0x4, fixed_abs, tag = 'smem constant byte address 0x4 - core index']
  #allocation1 [shape = 'u32[144,128]{1,0:T(1,128)}', space=vmem, size = 0x12000, scoped, tag = 'internal scratch']
  #allocation2 [shape = 's32[1]{0}', space=sflag, size = 0x4, scoped, tag = 'scratch operand']
  #allocation3 [shape = 's32[]', space=sflag, size = 0x4, offset = 0, fixed_abs, tag = 'sflag constant byte address 0x0 - dummy sync flag']
  #allocation4 [shape = 'u32[0]{0}', space=smem, size = 0, offset = 0, fixed_abs, tag = 'smem constant byte address 0x0 - null']
  %s0 = inlined_call_operand.hbm [shape: f32[2,4,16,16], index: 0, kind: input, shape index: {}]
  %s1 = inlined_call_operand.hbm [shape: f32[2,4,16,16], index: 1, kind: output, shape index: {}]
  %s2 = sld [smem:[#allocation0]]
  $region2: #{tpu_custom_call.1} parent=0
    _
  %s4 = ssub.s32 1, %s2
  %s5 = scalar_select 0, %s4, %s2
  %s7 = sshll.u32 1, 14
  %s8 = sxor.u32 4294967295, %s7
  %s11 = sshll.u32 3, 24
  %s12 = sxor.u32 4294967295, %s11
  %s13 = sand.u32 0, %s12
  %s15 = sor.u32 %s13, 0
  %18 = dma.general %s0, 2048, %s1, [#allocation2], [#allocation3], [#allocation4], %s15, 0
  %s19 = smul.u32 2, 4
  %s20 = smul.u32 %s19, 16
  %s21 = smul.u32 %s20, 1
  %s22 = sshll.u32 %s21, 4
  %23 = dma.done [#allocation2], %s22
  %24 = vsyncmov [#allocation2]
  %s25 = vpop.sfrf %24
  %p26 = scmp.eq.s32.totalorder %s25, 0
  %p27 = pneg %p26
  %29 = shalt.err (%p27)

</llo_original>
